<compile_context>
chip_gen: v7x
topology: tpu7x:2x2x1
jax: 0.10.0
libtpu: 0.0.40
codegen_flags: <defaults>
</compile_context>

<pallas_src>
import functools
import math

import numpy as np
import jax
import jax.numpy as jnp
from jax import lax
from jax.experimental import pallas as pl
from jax.experimental.pallas import tpu as pltpu


def _bcos_pixel_tile_kernel(w_ref, x_ref, o_ref, *, max_out, out_c, b, inv_scale,
                            mm_dtype):
    """One (batch, pixel-tile) grid step.

    w_ref: (max_out*out_c, K)  row-normalized weight in mm_dtype, resident in VMEM
    x_ref: (K, tn)             activation tile: channels on sublanes, pixels on lanes
    o_ref: (out_c, tn)         output tile (lane-dense, tn multiple of 128)
    """
    p = x_ref[...]

    # Per-pixel input L2 norm: squares accumulated in f32, EUP rsqrt (no divide).
    pf = p.astype(jnp.float32)
    inv_norm = lax.rsqrt(jnp.sum(pf * pf, axis=0, keepdims=True) + 1e-6)    # (1, tn)

    # One fused MXU matmul over all max_out groups, f32 accumulation, native layouts.
    p_mm = p if p.dtype == mm_dtype else p.astype(mm_dtype)
    y = lax.dot_general(
        w_ref[...], p_mm,
        dimension_numbers=(((1,), (0,)), ((), ())),
        preferred_element_type=jnp.float32)                         # (max_out*out_c, tn)

    # Maxout: group m occupies rows [m*out_c, (m+1)*out_c). Static unroll (max_out tiny).
    out = y[0:out_c]
    for m in range(1, max_out):
        out = jnp.maximum(out, y[m * out_c:(m + 1) * out_c])

    if b != 1:
        abs_cos = jnp.abs(out * inv_norm) + 1e-6
        out = out * abs_cos if b == 2 else out * abs_cos ** (b - 1)  # no pow for b=2
    o_ref[...] = (out * inv_scale).astype(o_ref.dtype)


def _vmem_budget_bytes():
    """~75% of physical VMEM (v5e/v6e: 128 MiB, v7x: 64 MiB per TensorCore)."""
    cap = 64 * 1024 * 1024
    try:
        cap = int(pltpu.get_tpu_info().vmem_capacity_bytes)
    except Exception:
        pass
    return (cap * 3) // 4


def bcos_conv2d(x, weight, *, max_out=2, b=2, scale=None, scale_fact=100,
                block_n=2048, mm_dtype=jnp.bfloat16, out_dtype=None):
    """BcosConv2d.forward for kernel_size=1, stride=1, padding=0, groups=1, no bias.

    x:      (B, in_c, H, W)  NCHW, any float dtype (bf16 halves the input HBM stream)
    weight: (out_c*max_out, in_c, 1, 1) PyTorch conv weight layout
    returns (B, out_c, H, W) in out_dtype (defaults to x.dtype)
    """
    B, C, H, W = x.shape
    out_ch, in_c, kh, kw = weight.shape
    if (kh, kw) != (1, 1):
        # TODO(synk): kernel_size>1 / stride / padding need an im2col patch front-end;
        # the Pallas kernel itself is unchanged (norm == ||patch||_2 per output pixel).
        raise NotImplementedError("only kernel_size=1, stride=1, padding=0 implemented")
    assert C == in_c and out_ch % max_out == 0
    out_c = out_ch // max_out
    K = in_c * kh * kw
    out_dtype = x.dtype if out_dtype is None else out_dtype

    if scale is None:
        scale = math.sqrt(kh * kw) * math.sqrt(in_c) / scale_fact
    inv_scale = 1.0 / float(scale)

    # ---- one-time weight prep (tiny; plain XLA per review) --------------------------
    # Row L2-normalize the flattened conv weight, regroup rows so PyTorch channel
    # c = k*max_out + m becomes fused-matmul row m*out_c + k, and cast to the MXU dtype.
    # (Zero-norm rows give inf/NaN, matching the PyTorch module's divide-by-zero.)
    w_flat = weight.reshape(out_ch, K).astype(jnp.float32)
    w_hat = w_flat * lax.rsqrt(jnp.sum(w_flat * w_flat, axis=1, keepdims=True))
    w_grouped = (w_hat.reshape(out_c, max_out, K)
                 .transpose(1, 0, 2)
                 .reshape(max_out * out_c, K)
                 .astype(mm_dtype))

    # ---- tiling: pixels of one batch element on the lane axis -----------------------
    HW = H * W
    act_bytes = np.dtype(x.dtype).itemsize
    out_bytes = np.dtype(out_dtype).itemsize
    w_bytes = max_out * out_c * K * np.dtype(mm_dtype).itemsize     # single resident copy
    budget = _vmem_budget_bytes()
    # weight (1 buffer) + double-buffered activation tile + double-buffered output tile
    per_col = 2 * K * act_bytes + 2 * out_c * out_bytes
    tn_budget = max(128, (budget - w_bytes - (4 << 20)) // max(per_col, 1))
    tn = min(block_n, tn_budget, pl.cdiv(HW, 128) * 128)
    tn = max(128, (tn // 128) * 128)                                 # lane-dense tiles
    hw_pad = pl.cdiv(HW, tn) * tn

    x3 = x.reshape(B, K, HW)                                         # free (NCHW contiguous)
    if hw_pad != HW:
        x3 = jnp.pad(x3, ((0, 0), (0, 0), (0, hw_pad - HW)))         # zero pixels -> zero out

    kernel = functools.partial(
        _bcos_pixel_tile_kernel, max_out=max_out, out_c=out_c, b=b,
        inv_scale=inv_scale, mm_dtype=mm_dtype)

    n_pix = B * hw_pad
    flops = 2 * max_out * out_c * K * n_pix + 8 * out_c * n_pix
    bytes_accessed = (K * n_pix * act_bytes + out_c * n_pix * out_bytes + w_bytes)

    y = pl.pallas_call(
        kernel,
        out_shape=jax.ShapeDtypeStruct((B, out_c, hw_pad), out_dtype),
        grid_spec=pltpu.PrefetchScalarGridSpec(
            num_scalar_prefetch=0,
            grid=(B, hw_pad // tn),
            in_specs=[
                # Normalized weight: unblocked, one resident VMEM copy (no double buffer,
                # no re-DMA, no per-step dtype repack).
                pl.BlockSpec(memory_space=pltpu.MemorySpace.VMEM),
                # Activation tile: batch squeezed, channels on sublanes, pixels on lanes.
                # (If profiles show exposed DMA, sweep pipeline_mode=pl.Buffered(3) here.)
                pl.BlockSpec((pl.Squeezed(), K, tn), lambda bi, i: (bi, 0, i)),
            ],
            out_specs=pl.BlockSpec((pl.Squeezed(), out_c, tn), lambda bi, i: (bi, 0, i)),
        ),
        compiler_params=pltpu.CompilerParams(
            dimension_semantics=("parallel", "parallel"),   # independent tiles -> megacore
            vmem_limit_bytes=int(budget),
        ),
        cost_estimate=pl.CostEstimate(
            flops=int(flops), transcendentals=int(n_pix),
            bytes_accessed=int(bytes_accessed)),
    )(w_grouped, x3)

    if hw_pad != HW:
        y = y[:, :, :HW]
    return y.reshape(B, out_c, H, W)


def bcos_conv2d_reference(x, weight, *, max_out=2, b=2, scale=None, scale_fact=100):
    """Pure-JAX mirror of the PyTorch BcosConv2d forward (kernel_size=1 path)."""
    out_ch, in_c, kh, kw = weight.shape
    w_flat = weight.reshape(out_ch, -1)
    w_hat = w_flat / jnp.linalg.norm(w_flat, axis=1, keepdims=True)
    y = jnp.einsum("ok,bkhw->bohw", w_hat, x,
                   precision=jax.lax.Precision.HIGHEST)              # 1x1 conv
    Bsz, _, H, W = x.shape
    out_c = out_ch // max_out
    if max_out > 1:
        y = y.reshape(Bsz, out_c, max_out, H, W).max(axis=2)
    if scale is None:
        scale = math.sqrt(kh * kw) * math.sqrt(in_c) / scale_fact
    if b == 1:
        return y / scale
    norm = jnp.sqrt((x ** 2).sum(axis=1, keepdims=True) * (kh * kw) + 1e-6)
    abs_cos = jnp.abs(y / norm) + 1e-6
    return y * abs_cos ** (b - 1) / scale


if __name__ == "__main__":
    key = jax.random.PRNGKey(0)
    k_x, k_w = jax.random.split(key)

    batch, in_c, out_c = 2, 4, 4
    H = W = 16
    max_out, b_exp = 2, 2
    out_ch = out_c * max_out

    x = jax.random.normal(k_x, (batch, in_c, H, W), dtype=jnp.float32)
    # Kaiming-uniform-like init for a 1x1 conv weight (out_ch, in_c, 1, 1).
    bound = 1.0 / math.sqrt(in_c)
    weight = jax.random.uniform(
        k_w, (out_ch, in_c, 1, 1), minval=-bound, maxval=bound, dtype=jnp.float32)

    out = bcos_conv2d(x, weight, max_out=max_out, b=b_exp)
    out = jax.block_until_ready(out)

    ref = bcos_conv2d_reference(x, weight, max_out=max_out, b=b_exp)
    assert out.shape == (batch, out_c, H, W)
    # bf16 MXU inputs (f32 accumulation) vs f32 reference; outputs are O(10-100) because
    # of the 1/scale ~= 50 factor, hence the loose absolute tolerance.
    assert jnp.allclose(out, ref, rtol=3e-2, atol=3e-1), "mismatch vs reference"
    print("KERNEL_OK")
</pallas_src>

<mosaic_0001>
module attributes {stable_mosaic.version = 11 : i64} {
  func.func @_bcos_pixel_tile_kernel(%arg0: i32, %arg1: i32, %arg2: memref<8x4xbf16, #tpu.memory_space<vmem>>, %arg3: memref<1x4x256xf32, #tpu.memory_space<vmem>>, %arg4: memref<1x4x256xf32, #tpu.memory_space<vmem>>) attributes {dimension_semantics = [#tpu.dimension_semantics<parallel>, #tpu.dimension_semantics<parallel>], iteration_bounds = array<i64: 2, 1>, scalar_prefetch = 0 : i64, scratch_operands = 0 : i64, tpu.core_type = #tpu.core_type<tc>, window_params = [{pipeline_mode = #tpu.pipeline_mode<synchronous>, transform_indices = @transform_0, window_bounds = array<i64: 8, 4>}, {transform_indices = @transform_1, window_bounds = array<i64: 1, 4, 256>}, {transform_indices = @transform_2, window_bounds = array<i64: 1, 4, 256>}]} {
    %c0 = arith.constant 0 : index
    %c0_0 = arith.constant 0 : index
    %c0_1 = arith.constant 0 : index
    %0 = vector.load %arg3[%c0, %c0_0, %c0_1] : memref<1x4x256xf32, #tpu.memory_space<vmem>>, vector<1x4x256xf32>
    %1 = vector.shape_cast %0 : vector<1x4x256xf32> to vector<4x256xf32>
    %2 = arith.mulf %1, %1 : vector<4x256xf32>
    %cst = arith.constant dense<0.000000e+00> : vector<256xf32>
    %3 = vector.multi_reduction <add>, %2, %cst [0] : vector<4x256xf32> to vector<256xf32>
    %4 = vector.shape_cast %3 : vector<256xf32> to vector<1x256xf32>
    %cst_2 = arith.constant 9.99999997E-7 : f32
    %5 = vector.broadcast %cst_2 : f32 to vector<1x256xf32>
    %6 = arith.addf %4, %5 : vector<1x256xf32>
    %7 = math.rsqrt %6 : vector<1x256xf32>
    %8 = arith.truncf %1 : vector<4x256xf32> to vector<4x256xbf16>
    %c0_3 = arith.constant 0 : index
    %c0_4 = arith.constant 0 : index
    %9 = vector.load %arg2[%c0_3, %c0_4] : memref<8x4xbf16, #tpu.memory_space<vmem>>, vector<8x4xbf16>
    %cst_5 = arith.constant dense<0.000000e+00> : vector<8x256xf32>
    %10 = tpu.matmul %9, %8, %cst_5 {dimension_numbers = #tpu.dot_dimension_numbers<[1], [0], [0], [1], [0, 0, 1, 1], [], []>} : vector<8x4xbf16>, vector<4x256xbf16>, vector<8x256xf32> -> vector<8x256xf32>
    %11 = vector.extract_strided_slice %10 {offsets = [0, 0], sizes = [4, 256], strides = [1, 1]} : vector<8x256xf32> to vector<4x256xf32>
    %12 = vector.extract_strided_slice %10 {offsets = [4, 0], sizes = [4, 256], strides = [1, 1]} : vector<8x256xf32> to vector<4x256xf32>
    %13 = arith.maximumf %11, %12 : vector<4x256xf32>
    %14 = vector.broadcast %7 : vector<1x256xf32> to vector<4x256xf32>
    %15 = arith.mulf %13, %14 : vector<4x256xf32>
    %16 = math.absf %15 : vector<4x256xf32>
    %cst_6 = arith.constant 9.99999997E-7 : f32
    %17 = vector.broadcast %cst_6 : f32 to vector<4x256xf32>
    %18 = arith.addf %16, %17 : vector<4x256xf32>
    %19 = arith.mulf %13, %18 : vector<4x256xf32>
    %cst_7 = arith.constant 5.000000e+01 : f32
    %20 = vector.broadcast %cst_7 : f32 to vector<4x256xf32>
    %21 = arith.mulf %19, %20 : vector<4x256xf32>
    %c0_8 = arith.constant 0 : index
    %c0_9 = arith.constant 0 : index
    %c0_10 = arith.constant 0 : index
    %22 = vector.load %arg4[%c0_8, %c0_9, %c0_10] : memref<1x4x256xf32, #tpu.memory_space<vmem>>, vector<1x4x256xf32>
    %23 = vector.shape_cast %22 : vector<1x4x256xf32> to vector<4x256xf32>
    %24 = vector.shape_cast %21 : vector<4x256xf32> to vector<1x4x256xf32>
    tpu.vector_store %arg4[%c0_8, %c0_9, %c0_10], %24 {strides = array<i32>} : memref<1x4x256xf32, #tpu.memory_space<vmem>>, vector<1x4x256xf32>,
    return
  }
  func.func @transform_0(%arg0: i32, %arg1: i32) -> (i32, i32) {
    %c0_i32 = arith.constant 0 : i32
    %c0_i32_0 = arith.constant 0 : i32
    %c0_i32_1 = arith.constant 0 : i32
    return %c0_i32, %c0_i32_0 : i32, i32
  }
  func.func @transform_1(%arg0: i32, %arg1: i32) -> (i32, i32, i32) {
    %c0_i32 = arith.constant 0 : i32
    %c0_i32_0 = arith.constant 0 : i32
    return %arg0, %c0_i32, %arg1 : i32, i32, i32
  }
  func.func @transform_2(%arg0: i32, %arg1: i32) -> (i32, i32, i32) {
    %c0_i32 = arith.constant 0 : i32
    %c0_i32_0 = arith.constant 0 : i32
    return %arg0, %c0_i32, %arg1 : i32, i32, i32
  }
}

</mosaic_0001>

<llo_original>
// kernel: tpu_custom_call.1
$region0: #{tpu_custom_call.1}
  #allocation0 [shape = 'u32[]', space=smem, size = 0x4, offset = 0x4, fixed_abs, tag = 'smem constant byte address 0x4 - core index']
  #allocation1 [shape = 'u32[144,128]{1,0:T(1,128)}', space=vmem, size = 0x12000, scoped, tag = 'internal scratch']
  %s0 = inlined_call_operand.vmem [shape: bf16[8,4], index: 0, kind: input, shape index: {}]
  %s1 = inlined_call_operand.hbm [shape: f32[2,4,256], index: 1, kind: input, shape index: {}]
  %s2 = inlined_call_operand.hbm [shape: f32[2,4,256], index: 2, kind: output, shape index: {}]
  %s3 = sld [smem:[#allocation0]]
  $region45: #{tpu_custom_call.1} parent=0
    _
  %s5 = ssub.s32 1, %s3
  %s6 = scalar_select 0, %s5, %s3
  $region1: #{tpu_custom_call.1} parent=0
    #allocation2 [shape = 'u8[8192]{0}', space=vmem, size = 0x2000, scoped, tag = 'input window, operand 1']
    #allocation3 [shape = 's32[2]{0}', space=sflag, size = 0x8, scoped, tag = 'scoped memory for tpu_custom_call.1']
    #allocation4 [shape = 's32[2]{0}', space=sflag, size = 0x8, scoped, tag = 'scoped memory for tpu_custom_call.1']
    #allocation5 [shape = 'u8[8192]{0}', space=vmem, size = 0x2000, scoped, tag = 'output window, operand 0']
    %7 = vsyncpa [#allocation3], 0
    %s8 = scalar_lea.sflag [#allocation3], 1
    %9 = vsyncpa %s8, 0
    %10 = vsyncpa [#allocation4], 0
    %s11 = scalar_lea.sflag [#allocation4], 1
    %12 = vsyncpa %s11, 0
    loop: start=0, step=1, limit=4
    $region2: #{tpu_custom_call.1} parent=1 // loop_pre_header
      _
    $region3: #{tpu_custom_call.1} parent=1 // loop_header
      %s14 = sphi 0, %s18
      %p15 = scmp.ge.s32.totalorder %s14, 4
      %s21 = sphi 0, %s33
      %s22 = sphi 0, %s29
      %s23 = sphi 0, %s21
      %s24 = sphi 0, %s22
      %s25 = sphi 0, %s23
      %s26 = sphi 0, %s24
      %s34 = sphi 0, %s34
      %s36 = sphi 0, %s34
      %s37 = sphi 0, %s36
      %s51 = sphi 0, %s37
      %s59 = sphi 0, %s61
      %s62 = sphi 0, %s59
      %s63 = sphi 0, %s62
      %s79 = sphi 0, %s63
      %s87 = sphi 0, %s89
      %s90 = sphi 0, %s87
      %s91 = sphi 0, %s90
      %s107 = sphi 0, %s91
    $region4: #{tpu_custom_call.1} parent=1 // loop_header_branch
      %17 = sbr.rel (%p15) target = $region8
    $region5: #{tpu_custom_call.1} parent=1 // loop_body
      %s19 = ssub.s32 %s14, 1
      %s20 = ssub.s32 %s14, 2
      %s27 = sadd.s32 1, %s22
      %p28 = scmp.ge.s32.totalorder %s27, 1
      %s29 = scalar_select %p28, 0, %s27
      %s30 = sadd.s32 1, %s21
      %s31 = scalar_select %p28, %s30, %s21
      %p32 = scmp.ge.s32.totalorder %s31, 2
      %s33 = scalar_select %p32, 0, %s31
      %s35 = sadd.s32 %s34, 1
      %p38 = scmp.eq.s32.totalorder %s14, 1
      %p39 = scmp.ne.s32.totalorder %s34, %s36
      %p40 = scmp.eq.s32.totalorder %s14, 0
      %p41 = por %p39, %p40
      %p42 = scmp.ne.s32.totalorder %s34, %s36
      %p43 = scmp.eq.s32.totalorder %s19, 1
      %p44 = por %p42, %p43
      %p45 = scmp.ne.s32.totalorder %s36, %s37
      %p46 = scmp.eq.s32.totalorder %s19, 0
      %p47 = por %p45, %p46
      %p48 = scmp.ne.s32.totalorder %s36, %s37
      %p49 = scmp.eq.s32.totalorder %s20, 1
      %p50 = por %p48, %p49
      %p52 = scmp.ne.s32.totalorder %s37, %s51
      %p53 = scmp.eq.s32.totalorder %s20, 0
      %p54 = por %p52, %p53
      %s55 = ssub.s32 %s21, %s33
      %s56 = ssub.s32 %s22, %s29
      %s57 = sor.u32 %s55, %s56
      %p58 = scmp.eq.s32.totalorder %s57, 0
      %s60 = sadd.s32 %s59, 1
      %s61 = scalar_select %p58, %s59, %s60
      %p64 = pneg %p58
      %p65 = scmp.eq.s32.totalorder %s14, 1
      %p66 = por %p64, %p65
      %p67 = scmp.ne.s32.totalorder %s59, %s62
      %p68 = scmp.eq.s32.totalorder %s14, 0
      %p69 = por %p67, %p68
      %p70 = scmp.ne.s32.totalorder %s59, %s62
      %p71 = scmp.eq.s32.totalorder %s19, 1
      %p72 = por %p70, %p71
      %p73 = scmp.ne.s32.totalorder %s62, %s63
      %p74 = scmp.eq.s32.totalorder %s19, 0
      %p75 = por %p73, %p74
      %p76 = scmp.ne.s32.totalorder %s62, %s63
      %p77 = scmp.eq.s32.totalorder %s20, 1
      %p78 = por %p76, %p77
      %p80 = scmp.ne.s32.totalorder %s63, %s79
      %p81 = scmp.eq.s32.totalorder %s20, 0
      %p82 = por %p80, %p81
      %s83 = ssub.s32 %s21, %s33
      %s84 = ssub.s32 %s22, %s29
      %s85 = sor.u32 %s83, %s84
      %p86 = scmp.eq.s32.totalorder %s85, 0
      %s88 = sadd.s32 %s87, 1
      %s89 = scalar_select %p86, %s87, %s88
      %p92 = pneg %p86
      %p93 = scmp.eq.s32.totalorder %s14, 1
      %p94 = por %p92, %p93
      %p95 = scmp.ne.s32.totalorder %s87, %s90
      %p96 = scmp.eq.s32.totalorder %s14, 0
      %p97 = por %p95, %p96
      %p98 = scmp.ne.s32.totalorder %s87, %s90
      %p99 = scmp.eq.s32.totalorder %s19, 1
      %p100 = por %p98, %p99
      %p101 = scmp.ne.s32.totalorder %s90, %s91
      %p102 = scmp.eq.s32.totalorder %s19, 0
      %p103 = por %p101, %p102
      %p104 = scmp.ne.s32.totalorder %s90, %s91
      %p105 = scmp.eq.s32.totalorder %s20, 1
      %p106 = por %p104, %p105
      %p108 = scmp.ne.s32.totalorder %s91, %s107
      %p109 = scmp.eq.s32.totalorder %s20, 0
      %p110 = por %p108, %p109
      %p111 = scmp.le.s32.totalorder 1, %s14
      %p112 = scmp.lt.s32.totalorder %s14, 3
      %p113 = pnand %p111, %p112
      %p114 = pneg %p113
      // Predicated region
      $region9: #{tpu_custom_call.1} parent=5 // pred_check
        _
      $region10: #{tpu_custom_call.1} parent=5 // pred_check_branch
        %116 = sbr.rel (%p113) target = $region12
      $region11: #{tpu_custom_call.1} parent=5 // pred_region
        %s117 = ssub.s32 %s14, 1
        // Predicated region
        $region13: #{tpu_custom_call.1} parent=11 // pred_check
          %p118 = pneg %p47
        $region14: #{tpu_custom_call.1} parent=11 // pred_check_branch
          %120 = sbr.rel (%p118) target = $region16
        $region15: #{tpu_custom_call.1} parent=11 // pred_region
          _
        $region16: #{tpu_custom_call.1} parent=11 // pred_fallthru
          _
      $region12: #{tpu_custom_call.1} parent=5 // pred_fallthru
        _
      %p121 = scmp.lt.s32.totalorder %s14, 2
      // Predicated region
      $region17: #{tpu_custom_call.1} parent=5 // pred_check
        %p122 = pneg %p121
      $region18: #{tpu_custom_call.1} parent=5 // pred_check_branch
        %124 = sbr.rel (%p122) target = $region20
      $region19: #{tpu_custom_call.1} parent=5 // pred_region
        // Predicated region
        $region21: #{tpu_custom_call.1} parent=19 // pred_check
          %p125 = pneg %p69
        $region22: #{tpu_custom_call.1} parent=19 // pred_check_branch
          %127 = sbr.rel (%p125) target = $region24
        $region23: #{tpu_custom_call.1} parent=19 // pred_region
          %s128 = sand.u32 %s59, 1
          %s129 = scalar_lea.sflag [#allocation3], %s128
          %s130 = sand.u32 %s59, 1
          %s131 = smul.addr %s130, 8
          %s132 = scalar_lea.vmem [#allocation2], %s131
          %s133 = smul.u32 2, %s22
          %s135 = ssub.s32 128, 128
          %136 = vsyncadd %s129, %s135
          %s137 = smul.addr %s21, 2
          %s138 = sadd.s32 %s133, %s137
          %s139 = smul.addr %s138, 64
          %s140 = scalar_lea.hbm %s1, %s139
          %s142 = sshll.u32 %s132, 4
          %s143 = int_to_ptr.vmem [resolvable:$true] %s142
          %145 = dma.hbm_to_vmem [thread:$0]  %s140, 128, %s143, %s129
        $region24: #{tpu_custom_call.1} parent=19 // pred_fallthru
          _
      $region20: #{tpu_custom_call.1} parent=5 // pred_fallthru
        _
      %p146 = scmp.le.s32.totalorder 1, %s14
      %p147 = scmp.lt.s32.totalorder %s14, 3
      %p148 = pnand %p146, %p147
      %p149 = pneg %p148
      // Predicated region
      $region25: #{tpu_custom_call.1} parent=5 // pred_check
        _
      $region26: #{tpu_custom_call.1} parent=5 // pred_check_branch
        %151 = sbr.rel (%p148) target = $region28
      $region27: #{tpu_custom_call.1} parent=5 // pred_region
        %s152 = ssub.s32 %s14, 1
        %s153 = sand.u32 %s62, 1
        %s154 = scalar_lea.sflag [#allocation3], %s153
        %s155 = sand.u32 %s62, 1
        %s156 = smul.addr %s155, 8
        %s157 = scalar_lea.vmem [#allocation2], %s156
        // Predicated region
        $region29: #{tpu_custom_call.1} parent=27 // pred_check
          %p158 = pneg %p75
        $region30: #{tpu_custom_call.1} parent=27 // pred_check_branch
          %160 = sbr.rel (%p158) target = $region32
        $region31: #{tpu_custom_call.1} parent=27 // pred_region
          %161 = dma.done %s154, 128
        $region32: #{tpu_custom_call.1} parent=27 // pred_fallthru
          _
        %p162 = pneg %p47
        %p163 = pneg %p44
        %s164 = sand.u32 %s62, 1
        %s165 = scalar_lea.sflag [#allocation3], %s164
        %s166 = sand.u32 %s62, 1
        %s167 = smul.addr %s166, 8
        %s168 = scalar_lea.vmem [#allocation2], %s167
        %p169 = pneg %p75
        %p170 = pneg %p72
        %p171 = pneg %p103
        %p172 = pneg %p100
        %s173 = sand.u32 %s90, 1
        %s174 = scalar_lea.sflag [#allocation4], %s173
        %s175 = sand.u32 %s90, 1
        %s176 = smul.addr %s175, 8
        %s177 = scalar_lea.vmem [#allocation5], %s176
        %s178 = smul.u32 2, %s24
        %s179 = smul.u32 2, %s24
        %v181 = vld [vmem:[%s157] sm:$0xff]
        %v182 = vmul.f32 %v181, %v181
        %v184 = vcombine.high %v182, %v182
        %vm186 = vcmask 1043456
        %v187 = vsel %vm186, %v182, 0.0
        %v188 = vrot.slane %v187, 4
        %v189 = vadd.f32 %v187, %v188
        %v190 = vrot.slane %v189, 2
        %v191 = vadd.f32 %v189, %v190
        %v192 = vrot.slane %v191, 1
        %v193 = vadd.f32 %v191, %v192
        %v194 = vsel %vm186, %v184, 0.0
        %v195 = vrot.slane %v194, 4
        %v196 = vadd.f32 %v194, %v195
        %v197 = vrot.slane %v196, 2
        %v198 = vadd.f32 %v196, %v197
        %v199 = vrot.slane %v198, 1
        %v200 = vadd.f32 %v198, %v199
        %v201 = vadd.f32 %v193, 1e-06
        %v202 = vadd.f32 %v200, 1e-06
        %v203 = vrsqrt.pop %v201
        %v204 = vrsqrt.pop %v202
        %v206 = vcombine.high %v181, %v181
        %v208 = vpack.c.bf16 %v181, %v181
        %v209 = vpack.c.bf16 %v206, %v206
        %v210 = vld [vmem:[%s0] sm:$0xf]
        %vm211 = vcmask 31744
        %v213 = vsel %vm211, %v210, 0
        %vm215 = vcmask 1041408
        %v217 = vsel %vm215, %v208, 0
        %v220 = vsel %vm215, %v209, 0
        %222 = vmatprep.subr.bf16.mxu0 %v220
        %223 = vmatpush1.bf16.msra.mxu0 %v217
        %224 = vmatprep.subr.bf16.mxu0 0
        %225 = vmatpush1.bf16.msra.mxu0 0
        %226 = vmatprep.subr.bf16.mxu0 0
        %227 = vmatpush1.bf16.msra.mxu0 0
        %228 = vmatprep.subr.bf16.mxu0 0
        %229 = vmatpush1.bf16.msra.mxu0 0
        %230 = vmatprep.subr.bf16.mxu0 0
        %231 = vmatpush1.bf16.msra.mxu0 0
        %232 = vmatprep.subr.bf16.mxu0 0
        %233 = vmatpush1.bf16.msra.mxu0 0
        %234 = vmatprep.subr.bf16.mxu0 0
        %235 = vmatpush1.bf16.msra.mxu0 0
        %236 = vmatprep.subr.bf16.mxu0 0
        %237 = vmatpush1.bf16.msra.mxu0 0
        %238 = vmatprep.subr.bf16.mxu0 0
        %239 = vmatpush1.bf16.msra.mxu0 0
        %240 = vmatprep.subr.bf16.mxu0 0
        %241 = vmatpush1.bf16.msra.mxu0 0
        %242 = vmatprep.subr.bf16.mxu0 0
        %243 = vmatpush1.bf16.msra.mxu0 0
        %244 = vmatprep.subr.bf16.mxu0 0
        %245 = vmatpush1.bf16.msra.mxu0 0
        %246 = vmatprep.subr.bf16.mxu0 0
        %247 = vmatpush1.bf16.msra.mxu0 0
        %248 = vmatprep.subr.bf16.mxu0 0
        %249 = vmatpush1.bf16.msra.mxu0 0
        %250 = vmatprep.subr.bf16.mxu0 0
        %251 = vmatpush1.bf16.msra.mxu0 0
        %252 = vmatprep.subr.bf16.mxu0 0
        %253 = vmatpush1.bf16.msra.mxu0 0
        %254 = vmatprep.mubr.bf16.mxu0 0
        %255 = vmatmul.mubr.bf16.gmra.mrb[0].mxu0 %v213
        %v256 = vpop.f32.mrb[0].mxu0
        %v257 = vadd.f32 0.0, %v256
        %v258 = vpop.f32.mrb[0].mxu0
        %v259 = vadd.f32 0.0, %v258
        %v260 = vpop.f32.mrb[0].mxu0
        %v261 = vpop.f32.mrb[0].mxu0
        %262 = vdwg.mxu0
        %v265 = vrot.slane %v257, 4
        %v266 = vrot.slane %v259, 4
        %v269 = vmax.f32 %v257, %v265
        %v270 = vmax.f32 %v259, %v266
        %v271 = vmul.f32 %v269, %v203
        %v272 = vmul.f32 %v270, %v204
        %v273 = vand.u32 2147483647, %v271
        %v274 = vand.u32 2147483647, %v272
        %v275 = vadd.f32 %v273, 1e-06
        %v276 = vadd.f32 %v274, 1e-06
        %v277 = vmul.f32 %v269, %v275
        %v278 = vmul.f32 %v270, %v276
        %v279 = vmul.f32 %v277, 50.0
        %v280 = vmul.f32 %v278, 50.0
        %v283 = vcombine.low %v279, %v280
        %285 = vst [vmem:[%s177] sm:$0xff] %v283
        %s286 = sand.u32 %s90, 1
        %s287 = scalar_lea.sflag [#allocation4], %s286
        %s288 = sand.u32 %s90, 1
        %s289 = smul.addr %s288, 8
        %s290 = scalar_lea.vmem [#allocation5], %s289
        // Predicated region
        $region33: #{tpu_custom_call.1} parent=27 // pred_check
          %p291 = pneg %p100
        $region34: #{tpu_custom_call.1} parent=27 // pred_check_branch
          %293 = sbr.rel (%p291) target = $region36
        $region35: #{tpu_custom_call.1} parent=27 // pred_region
          %s294 = smul.u32 2, %s24
          %s296 = ssub.s32 128, 128
          %297 = vsyncadd %s287, %s296
          %s298 = smul.addr %s23, 2
          %s299 = sadd.s32 %s294, %s298
          %s300 = smul.addr %s299, 64
          %s301 = scalar_lea.hbm %s2, %s300
          %s303 = sshll.u32 %s290, 4
          %s304 = int_to_ptr.vmem [resolvable:$true] %s303
          %306 = dma.vmem_to_hbm [thread:$0]  %s304, 128, %s301, %s287
        $region36: #{tpu_custom_call.1} parent=27 // pred_fallthru
          _
      $region28: #{tpu_custom_call.1} parent=5 // pred_fallthru
        _
      %p307 = scmp.le.s32.totalorder 2, %s14
      // Predicated region
      $region37: #{tpu_custom_call.1} parent=5 // pred_check
        %p308 = pneg %p307
      $region38: #{tpu_custom_call.1} parent=5 // pred_check_branch
        %310 = sbr.rel (%p308) target = $region40
      $region39: #{tpu_custom_call.1} parent=5 // pred_region
        %s311 = ssub.s32 %s14, 2
        // Predicated region
        $region41: #{tpu_custom_call.1} parent=39 // pred_check
          %p312 = pneg %p106
        $region42: #{tpu_custom_call.1} parent=39 // pred_check_branch
          %314 = sbr.rel (%p312) target = $region44
        $region43: #{tpu_custom_call.1} parent=39 // pred_region
          %s315 = sand.u32 %s91, 1
          %s316 = scalar_lea.sflag [#allocation4], %s315
          %s317 = sand.u32 %s91, 1
          %s318 = smul.addr %s317, 8
          %s319 = scalar_lea.vmem [#allocation5], %s318
          %320 = dma.done %s316, 128
        $region44: #{tpu_custom_call.1} parent=39 // pred_fallthru
          _
      $region40: #{tpu_custom_call.1} parent=5 // pred_fallthru
        _
    $region6: #{tpu_custom_call.1} parent=1 // loop_footer
      %s18 = sadd.s32 1, %s14
    $region7: #{tpu_custom_call.1} parent=1 // loop_footer_branch
      %13 = sbr.rel target = $region3
    $region8: #{tpu_custom_call.1} parent=1 // loop_exit
      _
    %321 = vsyncpa [#allocation3], 1
    %s322 = scalar_lea.sflag [#allocation3], 1
    %323 = vsyncpa %s322, 1
    %324 = vsyncpa [#allocation4], 1
    %s325 = scalar_lea.sflag [#allocation4], 1
    %326 = vsyncpa %s325, 1

</llo_original>
